<compile_context>
chip_gen: v5e
topology: v5e:2x2
jax: 0.10.0
libtpu: 0.0.40
codegen_flags: <defaults>
</compile_context>

<pallas_src>
import jax
import jax.numpy as jnp
from jax import lax
from jax.experimental import pallas as pl
from jax.experimental.pallas import tpu as pltpu


def _round_up(x: int, m: int) -> int:
    return ((x + m - 1) // m) * m


def _rnn_seq_kernel(w_ref, y0_ref, u_ref, out_ref, y_carry):
    """One (batch-block, time-chunk) grid point.

    w_ref:   (N_pad, N_pad)    padded W^T, VMEM-resident (constant index, single-buffered)
    y0_ref:  (tb, N_pad)       initial state for this batch block
    u_ref:   (C, tb, N_pad)    precomputed x_t @ W_in^T + bias for C timesteps
    out_ref: (C, tb, N_pad)    state after each of the C timesteps
    y_carry: (tb, N_pad) f32   VMEM scratch carrying the recurrent state
    """
    c = pl.program_id(1)

    # Seed the recurrent carry at the first time-chunk of this batch block.
    @pl.when(c == 0)
    def _():
        y_carry[...] = y0_ref[...].astype(jnp.float32)

    num_steps = u_ref.shape[0]  # static chunk length C

    def step(t, y):
        # Serial critical path per step: one MXU push + EUP tanh; everything
        # else (input projection, bias) was hoisted out of the recurrence.
        pre = jnp.dot(y.astype(w_ref.dtype), w_ref[...],
                      preferred_element_type=jnp.float32)
        y_new = jnp.tanh(pre + u_ref[t].astype(jnp.float32))   # f32 (v5e-safe)
        # TODO(synk): optional bf16 tanh on v6e/v7x (bf16 EUP) would shave some
        # per-step latency; kept f32 so the recurrence matches torch exactly.
        out_ref[t] = y_new.astype(out_ref.dtype)
        return y_new

    y_carry[...] = lax.fori_loop(0, num_steps, step, y_carry[...], unroll=True)


def rnn_forward_seq(W, W_in, bias, y0, xs, *, block_b=None, chunk_t=8,
                    compute_dtype=None, out_dtype=None):
    """Run T RNN forward steps (the module's forward(x) applied sequentially).

    Args:
      W:    (N, N) recurrent weights.
      W_in: (N, M) input weights.
      bias: (N,)   bias.
      y0:   (B, N) initial state per batch element.
      xs:   (T, B, M) inputs for T timesteps.
      compute_dtype: MXU operand dtype for the recurrence (W^T, y, u). Default =
        W.dtype (exact parity). bf16 is valid on v5e/v6e/v7x (carry, bias add
        and tanh remain f32); divergence vs f32 grows with T.
      out_dtype: dtype of the returned states (halves HBM writeback if bf16).
    Returns:
      ys: (T, B, N) where ys[t] is the state after the t-th forward() call.
    """
    N = W.shape[0]
    M = W_in.shape[1]
    T, B, _ = xs.shape
    dtype = W.dtype
    compute_dtype = jnp.dtype(dtype if compute_dtype is None else compute_dtype)
    out_dtype = jnp.dtype(dtype if out_dtype is None else out_dtype)
    f32 = jnp.float32

    N_pad = _round_up(N, 128)            # lane-dense hidden dim
    B_pad = _round_up(B, 8)              # fill f32 sublanes
    if block_b is None:
        if B_pad >= 16:
            # >= 2 batch blocks so the "parallel" axis can shard across both
            # TensorCores on v7x; cap rows per MXU push at 256.
            block_b = min(_round_up((B_pad + 1) // 2, 8), 256)
        else:
            block_b = B_pad              # tiny batch: lean on time-chunking instead
    block_b = _round_up(min(block_b, B_pad), 8)
    B_pad = _round_up(B_pad, block_b)
    NB = B_pad // block_b

    C = max(1, min(chunk_t, T))          # timesteps per grid step
    T_pad = _round_up(T, C)
    TC = T_pad // C

    # ---- one-time setup (outside the recurrence) ---------------------------
    # Recurrent weight, transposed + zero-padded once.
    w_t = jnp.zeros((N_pad, N_pad), compute_dtype)
    w_t = w_t.at[:N, :N].set(jnp.asarray(W, compute_dtype).T)

    # Hoisted input projection + bias: one big fully-parallel GEMM (no y dep),
    # done here (XLA runs it at full MXU rate) instead of on the serial path.
    u = (jnp.asarray(xs, f32) @ jnp.asarray(W_in, f32).T
         + jnp.asarray(bias, f32))                               # (T, B, N)
    u_p = jnp.zeros((T_pad, B_pad, N_pad), compute_dtype)
    u_p = u_p.at[:T, :B, :N].set(u.astype(compute_dtype))

    y0_p = jnp.zeros((B_pad, N_pad), dtype).at[:B, :N].set(jnp.asarray(y0, dtype))

    # ---- explicit VMEM budget (weights single-buffered, streams double) -----
    csz = compute_dtype.itemsize
    vmem_needed = (
        N_pad * N_pad * csz                                   # W^T  (Buffered(1))
        + block_b * N_pad * jnp.dtype(dtype).itemsize         # y0   (Buffered(1))
        + 2 * C * block_b * N_pad * csz                       # u blocks (double-buf)
        + 2 * C * block_b * N_pad * out_dtype.itemsize        # out blocks (double-buf)
        + block_b * N_pad * 4                                 # f32 carry scratch
    )
    vmem_limit = min(max(int(vmem_needed * 1.25), 32 * 1024 * 1024),
                     100 * 1024 * 1024)

    ys_p = pl.pallas_call(
        _rnn_seq_kernel,
        out_shape=jax.ShapeDtypeStruct((T_pad, B_pad, N_pad), out_dtype),
        grid_spec=pltpu.PrefetchScalarGridSpec(
            num_scalar_prefetch=0,
            grid=(NB, TC),   # batch blocks (parallel) x time chunks (serial recurrence)
            in_specs=[
                # Recurrent weight: constant block index -> VMEM-resident; no
                # point double-buffering something that never changes.
                pl.BlockSpec((N_pad, N_pad), lambda b, c: (0, 0),
                             pipeline_mode=pl.Buffered(1)),
                # Initial state for this batch block (only read at c == 0).
                pl.BlockSpec((block_b, N_pad), lambda b, c: (b, 0),
                             pipeline_mode=pl.Buffered(1)),
                # Precomputed input projection for this time chunk / batch block.
                pl.BlockSpec((C, block_b, N_pad), lambda b, c: (c, b, 0)),
            ],
            out_specs=pl.BlockSpec((C, block_b, N_pad), lambda b, c: (c, b, 0)),
            scratch_shapes=[pltpu.VMEM((block_b, N_pad), jnp.float32)],
        ),
        compiler_params=pltpu.CompilerParams(
            dimension_semantics=("parallel", "arbitrary"),
            vmem_limit_bytes=vmem_limit),
    )(w_t, y0_p, u_p)

    return ys_p[:T, :B, :N]


def rnn_forward(W, W_in, bias, y, x):
    """Single RNN.forward(x) step: returns tanh(W @ y + W_in @ x + bias)."""
    ys = rnn_forward_seq(W, W_in, bias, y[None, :], x[None, None, :])
    return ys[0, 0]


if __name__ == "__main__":
    # Small deterministic problem: hidden N=32, input dim M=8, T=8 steps, batch B=2.
    N, M, T, B = 32, 8, 8, 2
    key = jax.random.PRNGKey(0)
    k_w, k_win, k_b, k_y, k_x = jax.random.split(key, 5)

    dtype = jnp.float32
    W = (jax.random.normal(k_w, (N, N), dtype) / jnp.sqrt(N)).astype(dtype)
    W_in = (jax.random.normal(k_win, (N, M), dtype) / jnp.sqrt(M)).astype(dtype)
    bias = (0.1 * jax.random.normal(k_b, (N,), dtype)).astype(dtype)
    y0 = jax.random.normal(k_y, (B, N), dtype).astype(dtype)
    xs = jax.random.normal(k_x, (T, B, M), dtype).astype(dtype)

    ys = jax.block_until_ready(rnn_forward_seq(W, W_in, bias, y0, xs))

    # Plain-JAX reference: apply the module's forward() T times.
    def step(y, x):
        y = jnp.tanh(y @ W.T + x @ W_in.T + bias)
        return y, y

    _, ys_ref = jax.lax.scan(step, y0, xs)

    assert ys.shape == (T, B, N) and ys.dtype == dtype
    assert jnp.allclose(ys, ys_ref, atol=1e-5, rtol=1e-5)

    # Single-step convenience path matches the module's forward() as well.
    y1 = jax.block_until_ready(rnn_forward(W, W_in, bias, y0[0], xs[0, 0]))
    assert jnp.allclose(y1, ys_ref[0, 0], atol=1e-5, rtol=1e-5)

    print("KERNEL_OK")
</pallas_src>

<mosaic_0001>
module attributes {stable_mosaic.version = 11 : i64} {
  func.func @_rnn_seq_kernel(%arg0: i32, %arg1: i32, %arg2: memref<128x128xf32, #tpu.memory_space<vmem>>, %arg3: memref<8x128xf32, #tpu.memory_space<vmem>>, %arg4: memref<8x8x128xf32, #tpu.memory_space<vmem>>, %arg5: memref<8x8x128xf32, #tpu.memory_space<vmem>>, %arg6: memref<8x128xf32, #tpu.memory_space<vmem>>) attributes {dimension_semantics = [#tpu.dimension_semantics<parallel>, #tpu.dimension_semantics<arbitrary>], iteration_bounds = array<i64: 1, 1>, scalar_prefetch = 0 : i64, scratch_operands = 1 : i64, tpu.core_type = #tpu.core_type<tc>, window_params = [{pipeline_mode = #tpu.pipeline_mode<synchronous>, transform_indices = @transform_0, window_bounds = array<i64: 128, 128>}, {pipeline_mode = #tpu.pipeline_mode<synchronous>, transform_indices = @transform_1, window_bounds = array<i64: 8, 128>}, {transform_indices = @transform_2, window_bounds = array<i64: 8, 8, 128>}, {transform_indices = @transform_3, window_bounds = array<i64: 8, 8, 128>}]} {
    %c0_i32 = arith.constant 0 : i32
    %0 = arith.cmpi eq, %arg1, %c0_i32 : i32
    %1 = arith.extui %0 : i1 to i32
    %c0_i32_0 = arith.constant 0 : i32
    %2 = arith.cmpi ne, %1, %c0_i32_0 : i32
    scf.if %2 {
      %c0_60 = arith.constant 0 : index
      %c0_61 = arith.constant 0 : index
      %93 = vector.load %arg3[%c0_60, %c0_61] : memref<8x128xf32, #tpu.memory_space<vmem>>, vector<8x128xf32>
      %c0_62 = arith.constant 0 : index
      %c0_63 = arith.constant 0 : index
      %94 = vector.load %arg6[%c0_62, %c0_63] : memref<8x128xf32, #tpu.memory_space<vmem>>, vector<8x128xf32>
      tpu.vector_store %arg6[%c0_62, %c0_63], %93 {strides = array<i32>} : memref<8x128xf32, #tpu.memory_space<vmem>>, vector<8x128xf32>,
    } else {
    }
    %c0 = arith.constant 0 : index
    %c0_1 = arith.constant 0 : index
    %3 = vector.load %arg6[%c0, %c0_1] : memref<8x128xf32, #tpu.memory_space<vmem>>, vector<8x128xf32>
    %c0_i32_2 = arith.constant 0 : i32
    %c0_3 = arith.constant 0 : index
    %c0_4 = arith.constant 0 : index
    %4 = vector.load %arg2[%c0_3, %c0_4] : memref<128x128xf32, #tpu.memory_space<vmem>>, vector<128x128xf32>
    %cst = arith.constant dense<0.000000e+00> : vector<8x128xf32>
    %5 = tpu.matmul %3, %4, %cst {dimension_numbers = #tpu.dot_dimension_numbers<[1], [0], [0], [1], [0, 0, 1, 1], [], []>} : vector<8x128xf32>, vector<128x128xf32>, vector<8x128xf32> -> vector<8x128xf32>
    %6 = arith.index_cast %c0_i32_2 : i32 to index
    %c0_5 = arith.constant 0 : index
    %c0_6 = arith.constant 0 : index
    %7 = vector.load %arg4[%6, %c0_5, %c0_6] : memref<8x8x128xf32, #tpu.memory_space<vmem>>, vector<1x8x128xf32>
    %8 = vector.shape_cast %7 : vector<1x8x128xf32> to vector<8x128xf32>
    %9 = arith.addf %5, %8 : vector<8x128xf32>
    %10 = math.tanh %9 : vector<8x128xf32>
    %11 = arith.index_cast %c0_i32_2 : i32 to index
    %c0_7 = arith.constant 0 : index
    %c0_8 = arith.constant 0 : index
    %12 = vector.load %arg5[%11, %c0_7, %c0_8] : memref<8x8x128xf32, #tpu.memory_space<vmem>>, vector<1x8x128xf32>
    %13 = vector.shape_cast %12 : vector<1x8x128xf32> to vector<8x128xf32>
    %14 = vector.shape_cast %10 : vector<8x128xf32> to vector<1x8x128xf32>
    tpu.vector_store %arg5[%11, %c0_7, %c0_8], %14 {strides = array<i32>} : memref<8x8x128xf32, #tpu.memory_space<vmem>>, vector<1x8x128xf32>,
    %c1_i32 = arith.constant 1 : i32
    %c0_9 = arith.constant 0 : index
    %c0_10 = arith.constant 0 : index
    %15 = vector.load %arg2[%c0_9, %c0_10] : memref<128x128xf32, #tpu.memory_space<vmem>>, vector<128x128xf32>
    %cst_11 = arith.constant dense<0.000000e+00> : vector<8x128xf32>
    %16 = tpu.matmul %10, %15, %cst_11 {dimension_numbers = #tpu.dot_dimension_numbers<[1], [0], [0], [1], [0, 0, 1, 1], [], []>} : vector<8x128xf32>, vector<128x128xf32>, vector<8x128xf32> -> vector<8x128xf32>
    %17 = arith.index_cast %c1_i32 : i32 to index
    %c0_12 = arith.constant 0 : index
    %c0_13 = arith.constant 0 : index
    %18 = vector.load %arg4[%17, %c0_12, %c0_13] : memref<8x8x128xf32, #tpu.memory_space<vmem>>, vector<1x8x128xf32>
    %19 = vector.shape_cast %18 : vector<1x8x128xf32> to vector<8x128xf32>
    %20 = arith.addf %16, %19 : vector<8x128xf32>
    %21 = math.tanh %20 : vector<8x128xf32>
    %22 = arith.index_cast %c1_i32 : i32 to index
    %c0_14 = arith.constant 0 : index
    %c0_15 = arith.constant 0 : index
    %23 = vector.load %arg5[%22, %c0_14, %c0_15] : memref<8x8x128xf32, #tpu.memory_space<vmem>>, vector<1x8x128xf32>
    %24 = vector.shape_cast %23 : vector<1x8x128xf32> to vector<8x128xf32>
    %25 = vector.shape_cast %21 : vector<8x128xf32> to vector<1x8x128xf32>
    tpu.vector_store %arg5[%22, %c0_14, %c0_15], %25 {strides = array<i32>} : memref<8x8x128xf32, #tpu.memory_space<vmem>>, vector<1x8x128xf32>,
    %c2_i32 = arith.constant 2 : i32
    %c0_16 = arith.constant 0 : index
    %c0_17 = arith.constant 0 : index
    %26 = vector.load %arg2[%c0_16, %c0_17] : memref<128x128xf32, #tpu.memory_space<vmem>>, vector<128x128xf32>
    %cst_18 = arith.constant dense<0.000000e+00> : vector<8x128xf32>
    %27 = tpu.matmul %21, %26, %cst_18 {dimension_numbers = #tpu.dot_dimension_numbers<[1], [0], [0], [1], [0, 0, 1, 1], [], []>} : vector<8x128xf32>, vector<128x128xf32>, vector<8x128xf32> -> vector<8x128xf32>
    %28 = arith.index_cast %c2_i32 : i32 to index
    %c0_19 = arith.constant 0 : index
    %c0_20 = arith.constant 0 : index
    %29 = vector.load %arg4[%28, %c0_19, %c0_20] : memref<8x8x128xf32, #tpu.memory_space<vmem>>, vector<1x8x128xf32>
    %30 = vector.shape_cast %29 : vector<1x8x128xf32> to vector<8x128xf32>
    %31 = arith.addf %27, %30 : vector<8x128xf32>
    %32 = math.tanh %31 : vector<8x128xf32>
    %33 = arith.index_cast %c2_i32 : i32 to index
    %c0_21 = arith.constant 0 : index
    %c0_22 = arith.constant 0 : index
    %34 = vector.load %arg5[%33, %c0_21, %c0_22] : memref<8x8x128xf32, #tpu.memory_space<vmem>>, vector<1x8x128xf32>
    %35 = vector.shape_cast %34 : vector<1x8x128xf32> to vector<8x128xf32>
    %36 = vector.shape_cast %32 : vector<8x128xf32> to vector<1x8x128xf32>
    tpu.vector_store %arg5[%33, %c0_21, %c0_22], %36 {strides = array<i32>} : memref<8x8x128xf32, #tpu.memory_space<vmem>>, vector<1x8x128xf32>,
    %c3_i32 = arith.constant 3 : i32
    %c0_23 = arith.constant 0 : index
    %c0_24 = arith.constant 0 : index
    %37 = vector.load %arg2[%c0_23, %c0_24] : memref<128x128xf32, #tpu.memory_space<vmem>>, vector<128x128xf32>
    %cst_25 = arith.constant dense<0.000000e+00> : vector<8x128xf32>
    %38 = tpu.matmul %32, %37, %cst_25 {dimension_numbers = #tpu.dot_dimension_numbers<[1], [0], [0], [1], [0, 0, 1, 1], [], []>} : vector<8x128xf32>, vector<128x128xf32>, vector<8x128xf32> -> vector<8x128xf32>
    %39 = arith.index_cast %c3_i32 : i32 to index
    %c0_26 = arith.constant 0 : index
    %c0_27 = arith.constant 0 : index
    %40 = vector.load %arg4[%39, %c0_26, %c0_27] : memref<8x8x128xf32, #tpu.memory_space<vmem>>, vector<1x8x128xf32>
    %41 = vector.shape_cast %40 : vector<1x8x128xf32> to vector<8x128xf32>
    %42 = arith.addf %38, %41 : vector<8x128xf32>
    %43 = math.tanh %42 : vector<8x128xf32>
    %44 = arith.index_cast %c3_i32 : i32 to index
    %c0_28 = arith.constant 0 : index
    %c0_29 = arith.constant 0 : index
    %45 = vector.load %arg5[%44, %c0_28, %c0_29] : memref<8x8x128xf32, #tpu.memory_space<vmem>>, vector<1x8x128xf32>
    %46 = vector.shape_cast %45 : vector<1x8x128xf32> to vector<8x128xf32>
    %47 = vector.shape_cast %43 : vector<8x128xf32> to vector<1x8x128xf32>
    tpu.vector_store %arg5[%44, %c0_28, %c0_29], %47 {strides = array<i32>} : memref<8x8x128xf32, #tpu.memory_space<vmem>>, vector<1x8x128xf32>,
    %c4_i32 = arith.constant 4 : i32
    %c0_30 = arith.constant 0 : index
    %c0_31 = arith.constant 0 : index
    %48 = vector.load %arg2[%c0_30, %c0_31] : memref<128x128xf32, #tpu.memory_space<vmem>>, vector<128x128xf32>
    %cst_32 = arith.constant dense<0.000000e+00> : vector<8x128xf32>
    %49 = tpu.matmul %43, %48, %cst_32 {dimension_numbers = #tpu.dot_dimension_numbers<[1], [0], [0], [1], [0, 0, 1, 1], [], []>} : vector<8x128xf32>, vector<128x128xf32>, vector<8x128xf32> -> vector<8x128xf32>
    %50 = arith.index_cast %c4_i32 : i32 to index
    %c0_33 = arith.constant 0 : index
    %c0_34 = arith.constant 0 : index
    %51 = vector.load %arg4[%50, %c0_33, %c0_34] : memref<8x8x128xf32, #tpu.memory_space<vmem>>, vector<1x8x128xf32>
    %52 = vector.shape_cast %51 : vector<1x8x128xf32> to vector<8x128xf32>
    %53 = arith.addf %49, %52 : vector<8x128xf32>
    %54 = math.tanh %53 : vector<8x128xf32>
    %55 = arith.index_cast %c4_i32 : i32 to index
    %c0_35 = arith.constant 0 : index
    %c0_36 = arith.constant 0 : index
    %56 = vector.load %arg5[%55, %c0_35, %c0_36] : memref<8x8x128xf32, #tpu.memory_space<vmem>>, vector<1x8x128xf32>
    %57 = vector.shape_cast %56 : vector<1x8x128xf32> to vector<8x128xf32>
    %58 = vector.shape_cast %54 : vector<8x128xf32> to vector<1x8x128xf32>
    tpu.vector_store %arg5[%55, %c0_35, %c0_36], %58 {strides = array<i32>} : memref<8x8x128xf32, #tpu.memory_space<vmem>>, vector<1x8x128xf32>,
    %c5_i32 = arith.constant 5 : i32
    %c0_37 = arith.constant 0 : index
    %c0_38 = arith.constant 0 : index
    %59 = vector.load %arg2[%c0_37, %c0_38] : memref<128x128xf32, #tpu.memory_space<vmem>>, vector<128x128xf32>
    %cst_39 = arith.constant dense<0.000000e+00> : vector<8x128xf32>
    %60 = tpu.matmul %54, %59, %cst_39 {dimension_numbers = #tpu.dot_dimension_numbers<[1], [0], [0], [1], [0, 0, 1, 1], [], []>} : vector<8x128xf32>, vector<128x128xf32>, vector<8x128xf32> -> vector<8x128xf32>
    %61 = arith.index_cast %c5_i32 : i32 to index
    %c0_40 = arith.constant 0 : index
    %c0_41 = arith.constant 0 : index
    %62 = vector.load %arg4[%61, %c0_40, %c0_41] : memref<8x8x128xf32, #tpu.memory_space<vmem>>, vector<1x8x128xf32>
    %63 = vector.shape_cast %62 : vector<1x8x128xf32> to vector<8x128xf32>
    %64 = arith.addf %60, %63 : vector<8x128xf32>
    %65 = math.tanh %64 : vector<8x128xf32>
    %66 = arith.index_cast %c5_i32 : i32 to index
    %c0_42 = arith.constant 0 : index
    %c0_43 = arith.constant 0 : index
    %67 = vector.load %arg5[%66, %c0_42, %c0_43] : memref<8x8x128xf32, #tpu.memory_space<vmem>>, vector<1x8x128xf32>
    %68 = vector.shape_cast %67 : vector<1x8x128xf32> to vector<8x128xf32>
    %69 = vector.shape_cast %65 : vector<8x128xf32> to vector<1x8x128xf32>
    tpu.vector_store %arg5[%66, %c0_42, %c0_43], %69 {strides = array<i32>} : memref<8x8x128xf32, #tpu.memory_space<vmem>>, vector<1x8x128xf32>,
    %c6_i32 = arith.constant 6 : i32
    %c0_44 = arith.constant 0 : index
    %c0_45 = arith.constant 0 : index
    %70 = vector.load %arg2[%c0_44, %c0_45] : memref<128x128xf32, #tpu.memory_space<vmem>>, vector<128x128xf32>
    %cst_46 = arith.constant dense<0.000000e+00> : vector<8x128xf32>
    %71 = tpu.matmul %65, %70, %cst_46 {dimension_numbers = #tpu.dot_dimension_numbers<[1], [0], [0], [1], [0, 0, 1, 1], [], []>} : vector<8x128xf32>, vector<128x128xf32>, vector<8x128xf32> -> vector<8x128xf32>
    %72 = arith.index_cast %c6_i32 : i32 to index
    %c0_47 = arith.constant 0 : index
    %c0_48 = arith.constant 0 : index
    %73 = vector.load %arg4[%72, %c0_47, %c0_48] : memref<8x8x128xf32, #tpu.memory_space<vmem>>, vector<1x8x128xf32>
    %74 = vector.shape_cast %73 : vector<1x8x128xf32> to vector<8x128xf32>
    %75 = arith.addf %71, %74 : vector<8x128xf32>
    %76 = math.tanh %75 : vector<8x128xf32>
    %77 = arith.index_cast %c6_i32 : i32 to index
    %c0_49 = arith.constant 0 : index
    %c0_50 = arith.constant 0 : index
    %78 = vector.load %arg5[%77, %c0_49, %c0_50] : memref<8x8x128xf32, #tpu.memory_space<vmem>>, vector<1x8x128xf32>
    %79 = vector.shape_cast %78 : vector<1x8x128xf32> to vector<8x128xf32>
    %80 = vector.shape_cast %76 : vector<8x128xf32> to vector<1x8x128xf32>
    tpu.vector_store %arg5[%77, %c0_49, %c0_50], %80 {strides = array<i32>} : memref<8x8x128xf32, #tpu.memory_space<vmem>>, vector<1x8x128xf32>,
    %c7_i32 = arith.constant 7 : i32
    %c0_51 = arith.constant 0 : index
    %c0_52 = arith.constant 0 : index
    %81 = vector.load %arg2[%c0_51, %c0_52] : memref<128x128xf32, #tpu.memory_space<vmem>>, vector<128x128xf32>
    %cst_53 = arith.constant dense<0.000000e+00> : vector<8x128xf32>
    %82 = tpu.matmul %76, %81, %cst_53 {dimension_numbers = #tpu.dot_dimension_numbers<[1], [0], [0], [1], [0, 0, 1, 1], [], []>} : vector<8x128xf32>, vector<128x128xf32>, vector<8x128xf32> -> vector<8x128xf32>
    %83 = arith.index_cast %c7_i32 : i32 to index
    %c0_54 = arith.constant 0 : index
    %c0_55 = arith.constant 0 : index
    %84 = vector.load %arg4[%83, %c0_54, %c0_55] : memref<8x8x128xf32, #tpu.memory_space<vmem>>, vector<1x8x128xf32>
    %85 = vector.shape_cast %84 : vector<1x8x128xf32> to vector<8x128xf32>
    %86 = arith.addf %82, %85 : vector<8x128xf32>
    %87 = math.tanh %86 : vector<8x128xf32>
    %88 = arith.index_cast %c7_i32 : i32 to index
    %c0_56 = arith.constant 0 : index
    %c0_57 = arith.constant 0 : index
    %89 = vector.load %arg5[%88, %c0_56, %c0_57] : memref<8x8x128xf32, #tpu.memory_space<vmem>>, vector<1x8x128xf32>
    %90 = vector.shape_cast %89 : vector<1x8x128xf32> to vector<8x128xf32>
    %91 = vector.shape_cast %87 : vector<8x128xf32> to vector<1x8x128xf32>
    tpu.vector_store %arg5[%88, %c0_56, %c0_57], %91 {strides = array<i32>} : memref<8x8x128xf32, #tpu.memory_space<vmem>>, vector<1x8x128xf32>,
    %c8_i32 = arith.constant 8 : i32
    %c0_58 = arith.constant 0 : index
    %c0_59 = arith.constant 0 : index
    %92 = vector.load %arg6[%c0_58, %c0_59] : memref<8x128xf32, #tpu.memory_space<vmem>>, vector<8x128xf32>
    tpu.vector_store %arg6[%c0_58, %c0_59], %87 {strides = array<i32>} : memref<8x128xf32, #tpu.memory_space<vmem>>, vector<8x128xf32>,
    return
  }
  func.func @transform_0(%arg0: i32, %arg1: i32) -> (i32, i32) {
    %c0_i32 = arith.constant 0 : i32
    %c0_i32_0 = arith.constant 0 : i32
    %c0_i32_1 = arith.constant 0 : i32
    return %c0_i32, %c0_i32_0 : i32, i32
  }
  func.func @transform_1(%arg0: i32, %arg1: i32) -> (i32, i32) {
    %c0_i32 = arith.constant 0 : i32
    %c0_i32_0 = arith.constant 0 : i32
    return %arg0, %c0_i32 : i32, i32
  }
  func.func @transform_2(%arg0: i32, %arg1: i32) -> (i32, i32, i32) {
    %c0_i32 = arith.constant 0 : i32
    %c0_i32_0 = arith.constant 0 : i32
    return %arg1, %arg0, %c0_i32 : i32, i32, i32
  }
  func.func @transform_3(%arg0: i32, %arg1: i32) -> (i32, i32, i32) {
    %c0_i32 = arith.constant 0 : i32
    %c0_i32_0 = arith.constant 0 : i32
    return %arg1, %arg0, %c0_i32 : i32, i32, i32
  }
}

</mosaic_0001>

<llo_original>
// kernel: tpu_custom_call.1
$region0: #{tpu_custom_call.1}
  #allocation0 [shape = 'u32[]', space=smem, size = 0x4, offset = 0x4, fixed_abs, tag = 'smem constant byte address 0x4 - core index']
  #allocation1 [shape = 'u32[72,128]{1,0:T(1,128)}', space=vmem, size = 0x9000, scoped, tag = 'internal scratch']
  #allocation2 [shape = 'f32[8,128]{1,0:T(8,128)}', space=vmem, size = 0x1000, scoped, tag = 'scratch operand']
  %s0 = inlined_call_operand.hbm [shape: f32[128,128], index: 0, kind: input, shape index: {}]
  %s1 = inlined_call_operand.hbm [shape: f32[8,128], index: 1, kind: input, shape index: {}]
  %s2 = inlined_call_operand.hbm [shape: f32[8,8,128], index: 2, kind: input, shape index: {}]
  %s3 = inlined_call_operand.hbm [shape: f32[8,8,128], index: 3, kind: output, shape index: {}]
  %s4 = sld [smem:[#allocation0]]
  $region38: #{tpu_custom_call.1} parent=0
    _
  %s6 = ssub.s32 1, %s4
  %s7 = scalar_select 0, %s6, %s4
  $region1: #{tpu_custom_call.1} parent=0
    #allocation3 [shape = 'u8[65536]{0}', space=vmem, size = 0x10000, scoped, tag = 'input window, operand 0, single buffered']
    #allocation4 [shape = 's32[1]{0}', space=sflag, size = 0x4, scoped, tag = 'scoped memory for tpu_custom_call.1']
    #allocation5 [shape = 's32[1]{0}', space=sflag, size = 0x4, scoped, tag = 'scoped memory for tpu_custom_call.1']
    #allocation6 [shape = 'u8[4096]{0}', space=vmem, size = 0x1000, scoped, tag = 'input window, operand 1, single buffered']
    #allocation7 [shape = 's32[1]{0}', space=sflag, size = 0x4, scoped, tag = 'scoped memory for tpu_custom_call.1']
    #allocation8 [shape = 'u8[32768]{0}', space=vmem, size = 0x8000, scoped, tag = 'input window, operand 2, single buffered']
    #allocation9 [shape = 'u8[32768]{0}', space=vmem, size = 0x8000, scoped, tag = 'output window, operand 0, single buffered']
    %8 = vsyncpa [#allocation4], 0
    %9 = vsyncpa [#allocation7], 0
    %10 = vsyncpa [#allocation5], 0
    // Predicated region
    $region2: #{tpu_custom_call.1} parent=1 // pred_check
      _
    $region3: #{tpu_custom_call.1} parent=1 // pred_check_branch
      %12 = sbr.rel (0) target = $region5
    $region4: #{tpu_custom_call.1} parent=1 // pred_region
      %14 = vsyncadd [#allocation4], 0
      %s15 = sshll.u32 %s0, 4
      %s16 = int_to_ptr.hbm [resolvable:$true] %s15
      %s17 = sshll.u32 [#allocation3], 4
      %s18 = int_to_ptr.vmem [resolvable:$true] %s17
      %23 = dma.hbm_to_vmem [thread:$0]  %s16, 2048, %s18, [#allocation4], 128, 128, 8
    $region5: #{tpu_custom_call.1} parent=1 // pred_fallthru
      _
    // Predicated region
    $region6: #{tpu_custom_call.1} parent=1 // pred_check
      _
    $region7: #{tpu_custom_call.1} parent=1 // pred_check_branch
      %25 = sbr.rel (0) target = $region9
    $region8: #{tpu_custom_call.1} parent=1 // pred_region
      %27 = vsyncadd [#allocation7], 0
      %s29 = sshll.u32 %s1, 4
      %s30 = int_to_ptr.hbm [resolvable:$true] %s29
      %s31 = sshll.u32 [#allocation6], 4
      %s32 = int_to_ptr.vmem [resolvable:$true] %s31
      %34 = dma.hbm_to_vmem [thread:$0]  %s30, 128, %s32, [#allocation7]
    $region9: #{tpu_custom_call.1} parent=1 // pred_fallthru
      _
    // Predicated region
    $region10: #{tpu_custom_call.1} parent=1 // pred_check
      _
    $region11: #{tpu_custom_call.1} parent=1 // pred_check_branch
      %36 = sbr.rel (0) target = $region13
    $region12: #{tpu_custom_call.1} parent=1 // pred_region
      %38 = vsyncadd [#allocation7], 0
      %s39 = sshll.u32 %s2, 4
      %s40 = int_to_ptr.hbm [resolvable:$true] %s39
      %s41 = sshll.u32 [#allocation8], 4
      %s42 = int_to_ptr.vmem [resolvable:$true] %s41
      %47 = dma.hbm_to_vmem [thread:$0]  %s40, 1024, %s42, [#allocation7], 128, 128, 8
    $region13: #{tpu_custom_call.1} parent=1 // pred_fallthru
      _
    // Predicated region
    $region14: #{tpu_custom_call.1} parent=1 // pred_check
      _
    $region15: #{tpu_custom_call.1} parent=1 // pred_check_branch
      %49 = sbr.rel (0) target = $region17
    $region16: #{tpu_custom_call.1} parent=1 // pred_region
      %51 = dma.done [#allocation4], 2048
    $region17: #{tpu_custom_call.1} parent=1 // pred_fallthru
      _
    // Predicated region
    $region18: #{tpu_custom_call.1} parent=1 // pred_check
      _
    $region19: #{tpu_custom_call.1} parent=1 // pred_check_branch
      %53 = sbr.rel (0) target = $region21
    $region20: #{tpu_custom_call.1} parent=1 // pred_region
      %55 = dma.done [#allocation7], 128
    $region21: #{tpu_custom_call.1} parent=1 // pred_fallthru
      _
    // Predicated region
    $region22: #{tpu_custom_call.1} parent=1 // pred_check
      _
    $region23: #{tpu_custom_call.1} parent=1 // pred_check_branch
      %57 = sbr.rel (0) target = $region25
    $region24: #{tpu_custom_call.1} parent=1 // pred_region
      %59 = dma.done [#allocation7], 1024
    $region25: #{tpu_custom_call.1} parent=1 // pred_fallthru
      _
    %p60 = scmp.eq.s32.totalorder 0, 0
    // Predicated region
    $region26: #{tpu_custom_call.1} parent=1 // pred_check
      %p61 = pneg %p60
    $region27: #{tpu_custom_call.1} parent=1 // pred_check_branch
      %63 = sbr.rel (%p61) target = $region29
    $region28: #{tpu_custom_call.1} parent=1 // pred_region
      %v64 = vld [vmem:[#allocation6] sm:$0xff]
      %65 = vst [vmem:[#allocation2] sm:$0xff] %v64
    $region29: #{tpu_custom_call.1} parent=1 // pred_fallthru
      _
    %v66 = vld [vmem:[#allocation2] sm:$0xff]
    %v67 = vld [vmem:[#allocation3] sm:$0xff]
    %v68 = vld [vmem:[#allocation3 + $0x8] sm:$0xff]
    %v69 = vld [vmem:[#allocation3 + $0x10] sm:$0xff]
    %v70 = vld [vmem:[#allocation3 + $0x18] sm:$0xff]
    %v71 = vld [vmem:[#allocation3 + $0x20] sm:$0xff]
    %v72 = vld [vmem:[#allocation3 + $0x28] sm:$0xff]
    %v73 = vld [vmem:[#allocation3 + $0x30] sm:$0xff]
    %v74 = vld [vmem:[#allocation3 + $0x38] sm:$0xff]
    %v75 = vld [vmem:[#allocation3 + $0x40] sm:$0xff]
    %v76 = vld [vmem:[#allocation3 + $0x48] sm:$0xff]
    %v77 = vld [vmem:[#allocation3 + $0x50] sm:$0xff]
    %v78 = vld [vmem:[#allocation3 + $0x58] sm:$0xff]
    %v79 = vld [vmem:[#allocation3 + $0x60] sm:$0xff]
    %v80 = vld [vmem:[#allocation3 + $0x68] sm:$0xff]
    %v81 = vld [vmem:[#allocation3 + $0x70] sm:$0xff]
    %v82 = vld [vmem:[#allocation3 + $0x78] sm:$0xff]
    %v83 = vld [vmem:[#allocation8] sm:$0xff]
    %84 = vmatpush.msra.mxu0 %v82
    %85 = vmatpush.msra.mxu0 %v81
    %86 = vmatpush.msra.mxu0 %v80
    %87 = vmatpush.msra.mxu0 %v79
    %88 = vmatpush.msra.mxu0 %v78
    %89 = vmatpush.msra.mxu0 %v77
    %90 = vmatpush.msra.mxu0 %v76
    %91 = vmatpush.msra.mxu0 %v75
    %92 = vmatpush.msra.mxu0 %v74
    %93 = vmatpush.msra.mxu0 %v73
    %94 = vmatpush.msra.mxu0 %v72
    %95 = vmatpush.msra.mxu0 %v71
    %96 = vmatpush.msra.mxu0 %v70
    %97 = vmatpush.msra.mxu0 %v69
    %98 = vmatpush.msra.mxu0 %v68
    %99 = vmatpush.msra.mxu0 %v67
    %100 = vmatmul.f32.gmra.mxu0 %v66
    %v101 = vpop.f32.mrf.mxu0
    %v102 = vadd.f32 %v83, %v101
    %103 = vdwg.mxu0
    %v104 = vtanh.pop %v102
    %105 = vst [vmem:[#allocation9] sm:$0xff] %v104
    %v106 = vld [vmem:[#allocation3] sm:$0xff]
    %v107 = vld [vmem:[#allocation3 + $0x8] sm:$0xff]
    %v108 = vld [vmem:[#allocation3 + $0x10] sm:$0xff]
    %v109 = vld [vmem:[#allocation3 + $0x18] sm:$0xff]
    %v110 = vld [vmem:[#allocation3 + $0x20] sm:$0xff]
    %v111 = vld [vmem:[#allocation3 + $0x28] sm:$0xff]
    %v112 = vld [vmem:[#allocation3 + $0x30] sm:$0xff]
    %v113 = vld [vmem:[#allocation3 + $0x38] sm:$0xff]
    %v114 = vld [vmem:[#allocation3 + $0x40] sm:$0xff]
    %v115 = vld [vmem:[#allocation3 + $0x48] sm:$0xff]
    %v116 = vld [vmem:[#allocation3 + $0x50] sm:$0xff]
    %v117 = vld [vmem:[#allocation3 + $0x58] sm:$0xff]
    %v118 = vld [vmem:[#allocation3 + $0x60] sm:$0xff]
    %v119 = vld [vmem:[#allocation3 + $0x68] sm:$0xff]
    %v120 = vld [vmem:[#allocation3 + $0x70] sm:$0xff]
    %v121 = vld [vmem:[#allocation3 + $0x78] sm:$0xff]
    %s122 = scalar_lea.vmem [#allocation8], 8
    %v123 = vld [vmem:[%s122] sm:$0xff]
    %124 = vmatpush.msra.mxu0 %v121
    %125 = vmatpush.msra.mxu0 %v120
    %126 = vmatpush.msra.mxu0 %v119
    %127 = vmatpush.msra.mxu0 %v118
    %128 = vmatpush.msra.mxu0 %v117
    %129 = vmatpush.msra.mxu0 %v116
    %130 = vmatpush.msra.mxu0 %v115
    %131 = vmatpush.msra.mxu0 %v114
    %132 = vmatpush.msra.mxu0 %v113
    %133 = vmatpush.msra.mxu0 %v112
    %134 = vmatpush.msra.mxu0 %v111
    %135 = vmatpush.msra.mxu0 %v110
    %136 = vmatpush.msra.mxu0 %v109
    %137 = vmatpush.msra.mxu0 %v108
    %138 = vmatpush.msra.mxu0 %v107
    %139 = vmatpush.msra.mxu0 %v106
    %140 = vmatmul.f32.gmra.mxu0 %v104
    %v141 = vpop.f32.mrf.mxu0
    %v142 = vadd.f32 %v123, %v141
    %143 = vdwg.mxu0
    %v144 = vtanh.pop %v142
    %s145 = scalar_lea.vmem [#allocation9], 8
    %146 = vst [vmem:[%s145] sm:$0xff] %v144
    %v147 = vld [vmem:[#allocation3] sm:$0xff]
    %v148 = vld [vmem:[#allocation3 + $0x8] sm:$0xff]
    %v149 = vld [vmem:[#allocation3 + $0x10] sm:$0xff]
    %v150 = vld [vmem:[#allocation3 + $0x18] sm:$0xff]
    %v151 = vld [vmem:[#allocation3 + $0x20] sm:$0xff]
    %v152 = vld [vmem:[#allocation3 + $0x28] sm:$0xff]
    %v153 = vld [vmem:[#allocation3 + $0x30] sm:$0xff]
    %v154 = vld [vmem:[#allocation3 + $0x38] sm:$0xff]
    %v155 = vld [vmem:[#allocation3 + $0x40] sm:$0xff]
    %v156 = vld [vmem:[#allocation3 + $0x48] sm:$0xff]
    %v157 = vld [vmem:[#allocation3 + $0x50] sm:$0xff]
    %v158 = vld [vmem:[#allocation3 + $0x58] sm:$0xff]
    %v159 = vld [vmem:[#allocation3 + $0x60] sm:$0xff]
    %v160 = vld [vmem:[#allocation3 + $0x68] sm:$0xff]
    %v161 = vld [vmem:[#allocation3 + $0x70] sm:$0xff]
    %v162 = vld [vmem:[#allocation3 + $0x78] sm:$0xff]
    %s163 = scalar_lea.vmem [#allocation8], 16
    %v164 = vld [vmem:[%s163] sm:$0xff]
    %165 = vmatpush.msra.mxu0 %v162
    %166 = vmatpush.msra.mxu0 %v161
    %167 = vmatpush.msra.mxu0 %v160
    %168 = vmatpush.msra.mxu0 %v159
    %169 = vmatpush.msra.mxu0 %v158
    %170 = vmatpush.msra.mxu0 %v157
    %171 = vmatpush.msra.mxu0 %v156
    %172 = vmatpush.msra.mxu0 %v155
    %173 = vmatpush.msra.mxu0 %v154
    %174 = vmatpush.msra.mxu0 %v153
    %175 = vmatpush.msra.mxu0 %v152
    %176 = vmatpush.msra.mxu0 %v151
    %177 = vmatpush.msra.mxu0 %v150
    %178 = vmatpush.msra.mxu0 %v149
    %179 = vmatpush.msra.mxu0 %v148
    %180 = vmatpush.msra.mxu0 %v147
    %181 = vmatmul.f32.gmra.mxu0 %v144
    %v182 = vpop.f32.mrf.mxu0
    %v183 = vadd.f32 %v164, %v182
    %184 = vdwg.mxu0
    %v185 = vtanh.pop %v183
    %s186 = scalar_lea.vmem [#allocation9], 16
    %187 = vst [vmem:[%s186] sm:$0xff] %v185
    %v188 = vld [vmem:[#allocation3] sm:$0xff]
    %v189 = vld [vmem:[#allocation3 + $0x8] sm:$0xff]
    %v190 = vld [vmem:[#allocation3 + $0x10] sm:$0xff]
    %v191 = vld [vmem:[#allocation3 + $0x18] sm:$0xff]
    %v192 = vld [vmem:[#allocation3 + $0x20] sm:$0xff]
    %v193 = vld [vmem:[#allocation3 + $0x28] sm:$0xff]
    %v194 = vld [vmem:[#allocation3 + $0x30] sm:$0xff]
    %v195 = vld [vmem:[#allocation3 + $0x38] sm:$0xff]
    %v196 = vld [vmem:[#allocation3 + $0x40] sm:$0xff]
    %v197 = vld [vmem:[#allocation3 + $0x48] sm:$0xff]
    %v198 = vld [vmem:[#allocation3 + $0x50] sm:$0xff]
    %v199 = vld [vmem:[#allocation3 + $0x58] sm:$0xff]
    %v200 = vld [vmem:[#allocation3 + $0x60] sm:$0xff]
    %v201 = vld [vmem:[#allocation3 + $0x68] sm:$0xff]
    %v202 = vld [vmem:[#allocation3 + $0x70] sm:$0xff]
    %v203 = vld [vmem:[#allocation3 + $0x78] sm:$0xff]
    %s204 = scalar_lea.vmem [#allocation8], 24
    %v205 = vld [vmem:[%s204] sm:$0xff]
    %206 = vmatpush.msra.mxu0 %v203
    %207 = vmatpush.msra.mxu0 %v202
    %208 = vmatpush.msra.mxu0 %v201
    %209 = vmatpush.msra.mxu0 %v200
    %210 = vmatpush.msra.mxu0 %v199
    %211 = vmatpush.msra.mxu0 %v198
    %212 = vmatpush.msra.mxu0 %v197
    %213 = vmatpush.msra.mxu0 %v196
    %214 = vmatpush.msra.mxu0 %v195
    %215 = vmatpush.msra.mxu0 %v194
    %216 = vmatpush.msra.mxu0 %v193
    %217 = vmatpush.msra.mxu0 %v192
    %218 = vmatpush.msra.mxu0 %v191
    %219 = vmatpush.msra.mxu0 %v190
    %220 = vmatpush.msra.mxu0 %v189
    %221 = vmatpush.msra.mxu0 %v188
    %222 = vmatmul.f32.gmra.mxu0 %v185
    %v223 = vpop.f32.mrf.mxu0
    %v224 = vadd.f32 %v205, %v223
    %225 = vdwg.mxu0
    %v226 = vtanh.pop %v224
    %s227 = scalar_lea.vmem [#allocation9], 24
    %228 = vst [vmem:[%s227] sm:$0xff] %v226
    %v229 = vld [vmem:[#allocation3] sm:$0xff]
    %v230 = vld [vmem:[#allocation3 + $0x8] sm:$0xff]
    %v231 = vld [vmem:[#allocation3 + $0x10] sm:$0xff]
    %v232 = vld [vmem:[#allocation3 + $0x18] sm:$0xff]
    %v233 = vld [vmem:[#allocation3 + $0x20] sm:$0xff]
    %v234 = vld [vmem:[#allocation3 + $0x28] sm:$0xff]
    %v235 = vld [vmem:[#allocation3 + $0x30] sm:$0xff]
    %v236 = vld [vmem:[#allocation3 + $0x38] sm:$0xff]
    %v237 = vld [vmem:[#allocation3 + $0x40] sm:$0xff]
    %v238 = vld [vmem:[#allocation3 + $0x48] sm:$0xff]
    %v239 = vld [vmem:[#allocation3 + $0x50] sm:$0xff]
    %v240 = vld [vmem:[#allocation3 + $0x58] sm:$0xff]
    %v241 = vld [vmem:[#allocation3 + $0x60] sm:$0xff]
    %v242 = vld [vmem:[#allocation3 + $0x68] sm:$0xff]
    %v243 = vld [vmem:[#allocation3 + $0x70] sm:$0xff]
    %v244 = vld [vmem:[#allocation3 + $0x78] sm:$0xff]
    %s245 = scalar_lea.vmem [#allocation8], 32
    %v246 = vld [vmem:[%s245] sm:$0xff]
    %247 = vmatpush.msra.mxu0 %v244
    %248 = vmatpush.msra.mxu0 %v243
    %249 = vmatpush.msra.mxu0 %v242
    %250 = vmatpush.msra.mxu0 %v241
    %251 = vmatpush.msra.mxu0 %v240
    %252 = vmatpush.msra.mxu0 %v239
    %253 = vmatpush.msra.mxu0 %v238
    %254 = vmatpush.msra.mxu0 %v237
    %255 = vmatpush.msra.mxu0 %v236
    %256 = vmatpush.msra.mxu0 %v235
    %257 = vmatpush.msra.mxu0 %v234
    %258 = vmatpush.msra.mxu0 %v233
    %259 = vmatpush.msra.mxu0 %v232
    %260 = vmatpush.msra.mxu0 %v231
    %261 = vmatpush.msra.mxu0 %v230
    %262 = vmatpush.msra.mxu0 %v229
    %263 = vmatmul.f32.gmra.mxu0 %v226
    %v264 = vpop.f32.mrf.mxu0
    %v265 = vadd.f32 %v246, %v264
    %266 = vdwg.mxu0
    %v267 = vtanh.pop %v265
    %s268 = scalar_lea.vmem [#allocation9], 32
    %269 = vst [vmem:[%s268] sm:$0xff] %v267
    %v270 = vld [vmem:[#allocation3] sm:$0xff]
    %v271 = vld [vmem:[#allocation3 + $0x8] sm:$0xff]
    %v272 = vld [vmem:[#allocation3 + $0x10] sm:$0xff]
    %v273 = vld [vmem:[#allocation3 + $0x18] sm:$0xff]
    %v274 = vld [vmem:[#allocation3 + $0x20] sm:$0xff]
    %v275 = vld [vmem:[#allocation3 + $0x28] sm:$0xff]
    %v276 = vld [vmem:[#allocation3 + $0x30] sm:$0xff]
    %v277 = vld [vmem:[#allocation3 + $0x38] sm:$0xff]
    %v278 = vld [vmem:[#allocation3 + $0x40] sm:$0xff]
    %v279 = vld [vmem:[#allocation3 + $0x48] sm:$0xff]
    %v280 = vld [vmem:[#allocation3 + $0x50] sm:$0xff]
    %v281 = vld [vmem:[#allocation3 + $0x58] sm:$0xff]
    %v282 = vld [vmem:[#allocation3 + $0x60] sm:$0xff]
    %v283 = vld [vmem:[#allocation3 + $0x68] sm:$0xff]
    %v284 = vld [vmem:[#allocation3 + $0x70] sm:$0xff]
    %v285 = vld [vmem:[#allocation3 + $0x78] sm:$0xff]
    %s286 = scalar_lea.vmem [#allocation8], 40
    %v287 = vld [vmem:[%s286] sm:$0xff]
    %288 = vmatpush.msra.mxu0 %v285
    %289 = vmatpush.msra.mxu0 %v284
    %290 = vmatpush.msra.mxu0 %v283
    %291 = vmatpush.msra.mxu0 %v282
    %292 = vmatpush.msra.mxu0 %v281
    %293 = vmatpush.msra.mxu0 %v280
    %294 = vmatpush.msra.mxu0 %v279
    %295 = vmatpush.msra.mxu0 %v278
    %296 = vmatpush.msra.mxu0 %v277
    %297 = vmatpush.msra.mxu0 %v276
    %298 = vmatpush.msra.mxu0 %v275
    %299 = vmatpush.msra.mxu0 %v274
    %300 = vmatpush.msra.mxu0 %v273
    %301 = vmatpush.msra.mxu0 %v272
    %302 = vmatpush.msra.mxu0 %v271
    %303 = vmatpush.msra.mxu0 %v270
    %304 = vmatmul.f32.gmra.mxu0 %v267
    %v305 = vpop.f32.mrf.mxu0
    %v306 = vadd.f32 %v287, %v305
    %307 = vdwg.mxu0
    %v308 = vtanh.pop %v306
    %s309 = scalar_lea.vmem [#allocation9], 40
    %310 = vst [vmem:[%s309] sm:$0xff] %v308
    %v311 = vld [vmem:[#allocation3] sm:$0xff]
    %v312 = vld [vmem:[#allocation3 + $0x8] sm:$0xff]
    %v313 = vld [vmem:[#allocation3 + $0x10] sm:$0xff]
    %v314 = vld [vmem:[#allocation3 + $0x18] sm:$0xff]
    %v315 = vld [vmem:[#allocation3 + $0x20] sm:$0xff]
    %v316 = vld [vmem:[#allocation3 + $0x28] sm:$0xff]
    %v317 = vld [vmem:[#allocation3 + $0x30] sm:$0xff]
    %v318 = vld [vmem:[#allocation3 + $0x38] sm:$0xff]
    %v319 = vld [vmem:[#allocation3 + $0x40] sm:$0xff]
    %v320 = vld [vmem:[#allocation3 + $0x48] sm:$0xff]
    %v321 = vld [vmem:[#allocation3 + $0x50] sm:$0xff]
    %v322 = vld [vmem:[#allocation3 + $0x58] sm:$0xff]
    %v323 = vld [vmem:[#allocation3 + $0x60] sm:$0xff]
    %v324 = vld [vmem:[#allocation3 + $0x68] sm:$0xff]
    %v325 = vld [vmem:[#allocation3 + $0x70] sm:$0xff]
    %v326 = vld [vmem:[#allocation3 + $0x78] sm:$0xff]
    %s327 = scalar_lea.vmem [#allocation8], 48
    %v328 = vld [vmem:[%s327] sm:$0xff]
    %329 = vmatpush.msra.mxu0 %v326
    %330 = vmatpush.msra.mxu0 %v325
    %331 = vmatpush.msra.mxu0 %v324
    %332 = vmatpush.msra.mxu0 %v323
    %333 = vmatpush.msra.mxu0 %v322
    %334 = vmatpush.msra.mxu0 %v321
    %335 = vmatpush.msra.mxu0 %v320
    %336 = vmatpush.msra.mxu0 %v319
    %337 = vmatpush.msra.mxu0 %v318
    %338 = vmatpush.msra.mxu0 %v317
    %339 = vmatpush.msra.mxu0 %v316
    %340 = vmatpush.msra.mxu0 %v315
    %341 = vmatpush.msra.mxu0 %v314
    %342 = vmatpush.msra.mxu0 %v313
    %343 = vmatpush.msra.mxu0 %v312
    %344 = vmatpush.msra.mxu0 %v311
    %345 = vmatmul.f32.gmra.mxu0 %v308
    %v346 = vpop.f32.mrf.mxu0
    %v347 = vadd.f32 %v328, %v346
    %348 = vdwg.mxu0
    %v349 = vtanh.pop %v347
    %s350 = scalar_lea.vmem [#allocation9], 48
    %351 = vst [vmem:[%s350] sm:$0xff] %v349
    %v352 = vld [vmem:[#allocation3] sm:$0xff]
    %v353 = vld [vmem:[#allocation3 + $0x8] sm:$0xff]
    %v354 = vld [vmem:[#allocation3 + $0x10] sm:$0xff]
    %v355 = vld [vmem:[#allocation3 + $0x18] sm:$0xff]
    %v356 = vld [vmem:[#allocation3 + $0x20] sm:$0xff]
    %v357 = vld [vmem:[#allocation3 + $0x28] sm:$0xff]
    %v358 = vld [vmem:[#allocation3 + $0x30] sm:$0xff]
    %v359 = vld [vmem:[#allocation3 + $0x38] sm:$0xff]
    %v360 = vld [vmem:[#allocation3 + $0x40] sm:$0xff]
    %v361 = vld [vmem:[#allocation3 + $0x48] sm:$0xff]
    %v362 = vld [vmem:[#allocation3 + $0x50] sm:$0xff]
    %v363 = vld [vmem:[#allocation3 + $0x58] sm:$0xff]
    %v364 = vld [vmem:[#allocation3 + $0x60] sm:$0xff]
    %v365 = vld [vmem:[#allocation3 + $0x68] sm:$0xff]
    %v366 = vld [vmem:[#allocation3 + $0x70] sm:$0xff]
    %v367 = vld [vmem:[#allocation3 + $0x78] sm:$0xff]
    %s368 = scalar_lea.vmem [#allocation8], 56
    %v369 = vld [vmem:[%s368] sm:$0xff]
    %370 = vmatpush.msra.mxu0 %v367
    %371 = vmatpush.msra.mxu0 %v366
    %372 = vmatpush.msra.mxu0 %v365
    %373 = vmatpush.msra.mxu0 %v364
    %374 = vmatpush.msra.mxu0 %v363
    %375 = vmatpush.msra.mxu0 %v362
    %376 = vmatpush.msra.mxu0 %v361
    %377 = vmatpush.msra.mxu0 %v360
    %378 = vmatpush.msra.mxu0 %v359
    %379 = vmatpush.msra.mxu0 %v358
    %380 = vmatpush.msra.mxu0 %v357
    %381 = vmatpush.msra.mxu0 %v356
    %382 = vmatpush.msra.mxu0 %v355
    %383 = vmatpush.msra.mxu0 %v354
    %384 = vmatpush.msra.mxu0 %v353
    %385 = vmatpush.msra.mxu0 %v352
    %386 = vmatmul.f32.gmra.mxu0 %v349
    %v387 = vpop.f32.mrf.mxu0
    %v388 = vadd.f32 %v369, %v387
    %389 = vdwg.mxu0
    %v390 = vtanh.pop %v388
    %s391 = scalar_lea.vmem [#allocation9], 56
    %392 = vst [vmem:[%s391] sm:$0xff] %v390
    %393 = vst [vmem:[#allocation2] sm:$0xff] %v390
    // Predicated region
    $region30: #{tpu_custom_call.1} parent=1 // pred_check
      _
    $region31: #{tpu_custom_call.1} parent=1 // pred_check_branch
      %395 = sbr.rel (0) target = $region33
    $region32: #{tpu_custom_call.1} parent=1 // pred_region
      %397 = vsyncadd [#allocation5], 0
      %s398 = sshll.u32 [#allocation9], 4
      %s399 = int_to_ptr.vmem [resolvable:$true] %s398
      %s400 = sshll.u32 %s3, 4
      %s401 = int_to_ptr.hbm [resolvable:$true] %s400
      %406 = dma.vmem_to_hbm [thread:$0]  %s399, 1024, %s401, [#allocation5], 128, 128, 8
    $region33: #{tpu_custom_call.1} parent=1 // pred_fallthru
      _
    // Predicated region
    $region34: #{tpu_custom_call.1} parent=1 // pred_check
      _
    $region35: #{tpu_custom_call.1} parent=1 // pred_check_branch
      %408 = sbr.rel (0) target = $region37
    $region36: #{tpu_custom_call.1} parent=1 // pred_region
      %410 = dma.done [#allocation5], 1024
    $region37: #{tpu_custom_call.1} parent=1 // pred_fallthru
      _
    %411 = vsyncpa [#allocation4], 1
    %412 = vsyncpa [#allocation7], 1
    %413 = vsyncpa [#allocation5], 1

</llo_original>
